<compile_context>
chip_gen: v7x
topology: tpu7x:2x2x1
jax: 0.10.0
libtpu: 0.0.40
codegen_flags: <defaults>
</compile_context>

<pallas_src>
import functools

import jax
import jax.numpy as jnp
from jax.experimental import pallas as pl
from jax.experimental.pallas import tpu as pltpu


# Rows of x processed per grid step.  Blocks are (TM, T) + (TM, W) f32, which
# double-buffered stays well under the scoped VMEM default on all generations.
_MAX_ROW_TILE = 512


def _round_up(x, m):
    return ((x + m - 1) // m) * m


def _dp_pooling_kernel(x_ref, o_ref, *, l_dp, n_dp, num_windows, inv_n_dp):
    """x_ref: (TM, T); o_ref: (TM, W).

    Pure VPU/XLU: static contiguous lane slices + tiny cross-lane reductions.
    Exact f32 adds in the same grouping as the PyTorch reference
    (sum_late - sum_early) / N_DP.
    """
    x = x_ref[...].astype(jnp.float32)
    cols = []
    # Static unroll over windows (W is small; for very large W switch to a
    # pl.loop with dynamic slices).
    for w in range(num_windows):
        base = w * l_dp
        late = jnp.sum(
            x[:, base + l_dp - n_dp: base + l_dp], axis=-1, keepdims=True)
        early = jnp.sum(x[:, base: base + n_dp], axis=-1, keepdims=True)
        cols.append(late - early)
    dp = jnp.concatenate(cols, axis=-1) * inv_n_dp        # (TM, W) f32
    o_ref[...] = dp.astype(o_ref.dtype)


@functools.partial(jax.jit, static_argnames=("l_dp", "n_dp"))
def dp_pooling(x, *, l_dp, n_dp):
    b, n, t = x.shape
    if t % l_dp != 0:
        raise ValueError("T should be divisible by L_DP")
    if not (1 <= n_dp <= l_dp):
        raise ValueError("N_DP must satisfy 1 <= N_DP <= L_DP")
    num_windows = t // l_dp
    rows = b * n

    x2 = x.reshape(rows, t)                 # contiguous -> free

    if rows >= _MAX_ROW_TILE:
        tm = _MAX_ROW_TILE
        padded_rows = rows                  # ragged last block: Pallas masks it
    else:
        tm = _round_up(rows, 8)             # (8,128) sublane rule for the block
        padded_rows = tm
        if padded_rows != rows:
            x2 = jnp.pad(x2, ((0, padded_rows - rows), (0, 0)))

    grid = (pl.cdiv(padded_rows, tm),)

    # VMEM budget from the actual double-buffered (lane-padded) block bytes.
    lanes = lambda c: _round_up(c, 128)
    block_bytes = tm * (lanes(t) + lanes(num_windows)) * 4
    vmem_limit = max(8 * 1024 * 1024, 4 * block_bytes)

    kernel = functools.partial(
        _dp_pooling_kernel,
        l_dp=l_dp, n_dp=n_dp, num_windows=num_windows, inv_n_dp=1.0 / n_dp)

    out = pl.pallas_call(
        kernel,
        out_shape=jax.ShapeDtypeStruct((padded_rows, num_windows), x.dtype),
        grid=grid,
        in_specs=[pl.BlockSpec((tm, t), lambda i: (i, 0))],
        out_specs=pl.BlockSpec((tm, num_windows), lambda i: (i, 0)),
        compiler_params=pltpu.CompilerParams(
            dimension_semantics=("parallel",),
            vmem_limit_bytes=vmem_limit),
    )(x2)

    return out[:rows].reshape(b, n, num_windows)


if __name__ == "__main__":
    # Shapes implied by the surrounding HR_SNN model: 10 channels, T=100,
    # DP windows of length 5 with N_DP=2 taps -> (B, 10, 20) output.
    B, N, T = 2, 10, 100
    L_DP, N_DP = 5, 2

    key = jax.random.PRNGKey(0)
    x = jax.random.normal(key, (B, N, T), jnp.float32)

    out = dp_pooling(x, l_dp=L_DP, n_dp=N_DP)
    out = jax.block_until_ready(out)

    # Pure-JAX reference mirroring the PyTorch forward exactly.
    xr = x.reshape(B, N, T // L_DP, L_DP)
    ref = (xr[..., -N_DP:].sum(-1) - xr[..., :N_DP].sum(-1)) / N_DP

    assert out.shape == (B, N, T // L_DP), out.shape
    assert bool(jnp.all(jnp.isfinite(out)))
    max_err = float(jnp.max(jnp.abs(out - ref)))
    assert max_err < 1e-6, max_err
    print("KERNEL_OK")
</pallas_src>

<mosaic_0001>
module attributes {stable_mosaic.version = 11 : i64} {
  func.func @_dp_pooling_kernel(%arg0: i32, %arg1: memref<24x100xf32, #tpu.memory_space<vmem>>, %arg2: memref<24x20xf32, #tpu.memory_space<vmem>>) attributes {dimension_semantics = [#tpu.dimension_semantics<parallel>], iteration_bounds = array<i64: 1>, scalar_prefetch = 0 : i64, scratch_operands = 0 : i64, tpu.core_type = #tpu.core_type<tc>, window_params = [{transform_indices = @transform_0, window_bounds = array<i64: 24, 100>}, {transform_indices = @transform_1, window_bounds = array<i64: 24, 20>}]} {
    %c0 = arith.constant 0 : index
    %c0_0 = arith.constant 0 : index
    %0 = vector.load %arg1[%c0, %c0_0] : memref<24x100xf32, #tpu.memory_space<vmem>>, vector<24x100xf32>
    %1 = vector.extract_strided_slice %0 {offsets = [0, 3], sizes = [24, 2], strides = [1, 1]} : vector<24x100xf32> to vector<24x2xf32>
    %cst = arith.constant dense<0.000000e+00> : vector<24xf32>
    %2 = vector.multi_reduction <add>, %1, %cst [1] : vector<24x2xf32> to vector<24xf32>
    %3 = vector.shape_cast %2 : vector<24xf32> to vector<24x1xf32>
    %4 = vector.extract_strided_slice %0 {offsets = [0, 0], sizes = [24, 2], strides = [1, 1]} : vector<24x100xf32> to vector<24x2xf32>
    %cst_1 = arith.constant dense<0.000000e+00> : vector<24xf32>
    %5 = vector.multi_reduction <add>, %4, %cst_1 [1] : vector<24x2xf32> to vector<24xf32>
    %6 = vector.shape_cast %5 : vector<24xf32> to vector<24x1xf32>
    %7 = arith.subf %3, %6 : vector<24x1xf32>
    %8 = vector.extract_strided_slice %0 {offsets = [0, 8], sizes = [24, 2], strides = [1, 1]} : vector<24x100xf32> to vector<24x2xf32>
    %cst_2 = arith.constant dense<0.000000e+00> : vector<24xf32>
    %9 = vector.multi_reduction <add>, %8, %cst_2 [1] : vector<24x2xf32> to vector<24xf32>
    %10 = vector.shape_cast %9 : vector<24xf32> to vector<24x1xf32>
    %11 = vector.extract_strided_slice %0 {offsets = [0, 5], sizes = [24, 2], strides = [1, 1]} : vector<24x100xf32> to vector<24x2xf32>
    %cst_3 = arith.constant dense<0.000000e+00> : vector<24xf32>
    %12 = vector.multi_reduction <add>, %11, %cst_3 [1] : vector<24x2xf32> to vector<24xf32>
    %13 = vector.shape_cast %12 : vector<24xf32> to vector<24x1xf32>
    %14 = arith.subf %10, %13 : vector<24x1xf32>
    %15 = vector.extract_strided_slice %0 {offsets = [0, 13], sizes = [24, 2], strides = [1, 1]} : vector<24x100xf32> to vector<24x2xf32>
    %cst_4 = arith.constant dense<0.000000e+00> : vector<24xf32>
    %16 = vector.multi_reduction <add>, %15, %cst_4 [1] : vector<24x2xf32> to vector<24xf32>
    %17 = vector.shape_cast %16 : vector<24xf32> to vector<24x1xf32>
    %18 = vector.extract_strided_slice %0 {offsets = [0, 10], sizes = [24, 2], strides = [1, 1]} : vector<24x100xf32> to vector<24x2xf32>
    %cst_5 = arith.constant dense<0.000000e+00> : vector<24xf32>
    %19 = vector.multi_reduction <add>, %18, %cst_5 [1] : vector<24x2xf32> to vector<24xf32>
    %20 = vector.shape_cast %19 : vector<24xf32> to vector<24x1xf32>
    %21 = arith.subf %17, %20 : vector<24x1xf32>
    %22 = vector.extract_strided_slice %0 {offsets = [0, 18], sizes = [24, 2], strides = [1, 1]} : vector<24x100xf32> to vector<24x2xf32>
    %cst_6 = arith.constant dense<0.000000e+00> : vector<24xf32>
    %23 = vector.multi_reduction <add>, %22, %cst_6 [1] : vector<24x2xf32> to vector<24xf32>
    %24 = vector.shape_cast %23 : vector<24xf32> to vector<24x1xf32>
    %25 = vector.extract_strided_slice %0 {offsets = [0, 15], sizes = [24, 2], strides = [1, 1]} : vector<24x100xf32> to vector<24x2xf32>
    %cst_7 = arith.constant dense<0.000000e+00> : vector<24xf32>
    %26 = vector.multi_reduction <add>, %25, %cst_7 [1] : vector<24x2xf32> to vector<24xf32>
    %27 = vector.shape_cast %26 : vector<24xf32> to vector<24x1xf32>
    %28 = arith.subf %24, %27 : vector<24x1xf32>
    %29 = vector.extract_strided_slice %0 {offsets = [0, 23], sizes = [24, 2], strides = [1, 1]} : vector<24x100xf32> to vector<24x2xf32>
    %cst_8 = arith.constant dense<0.000000e+00> : vector<24xf32>
    %30 = vector.multi_reduction <add>, %29, %cst_8 [1] : vector<24x2xf32> to vector<24xf32>
    %31 = vector.shape_cast %30 : vector<24xf32> to vector<24x1xf32>
    %32 = vector.extract_strided_slice %0 {offsets = [0, 20], sizes = [24, 2], strides = [1, 1]} : vector<24x100xf32> to vector<24x2xf32>
    %cst_9 = arith.constant dense<0.000000e+00> : vector<24xf32>
    %33 = vector.multi_reduction <add>, %32, %cst_9 [1] : vector<24x2xf32> to vector<24xf32>
    %34 = vector.shape_cast %33 : vector<24xf32> to vector<24x1xf32>
    %35 = arith.subf %31, %34 : vector<24x1xf32>
    %36 = vector.extract_strided_slice %0 {offsets = [0, 28], sizes = [24, 2], strides = [1, 1]} : vector<24x100xf32> to vector<24x2xf32>
    %cst_10 = arith.constant dense<0.000000e+00> : vector<24xf32>
    %37 = vector.multi_reduction <add>, %36, %cst_10 [1] : vector<24x2xf32> to vector<24xf32>
    %38 = vector.shape_cast %37 : vector<24xf32> to vector<24x1xf32>
    %39 = vector.extract_strided_slice %0 {offsets = [0, 25], sizes = [24, 2], strides = [1, 1]} : vector<24x100xf32> to vector<24x2xf32>
    %cst_11 = arith.constant dense<0.000000e+00> : vector<24xf32>
    %40 = vector.multi_reduction <add>, %39, %cst_11 [1] : vector<24x2xf32> to vector<24xf32>
    %41 = vector.shape_cast %40 : vector<24xf32> to vector<24x1xf32>
    %42 = arith.subf %38, %41 : vector<24x1xf32>
    %43 = vector.extract_strided_slice %0 {offsets = [0, 33], sizes = [24, 2], strides = [1, 1]} : vector<24x100xf32> to vector<24x2xf32>
    %cst_12 = arith.constant dense<0.000000e+00> : vector<24xf32>
    %44 = vector.multi_reduction <add>, %43, %cst_12 [1] : vector<24x2xf32> to vector<24xf32>
    %45 = vector.shape_cast %44 : vector<24xf32> to vector<24x1xf32>
    %46 = vector.extract_strided_slice %0 {offsets = [0, 30], sizes = [24, 2], strides = [1, 1]} : vector<24x100xf32> to vector<24x2xf32>
    %cst_13 = arith.constant dense<0.000000e+00> : vector<24xf32>
    %47 = vector.multi_reduction <add>, %46, %cst_13 [1] : vector<24x2xf32> to vector<24xf32>
    %48 = vector.shape_cast %47 : vector<24xf32> to vector<24x1xf32>
    %49 = arith.subf %45, %48 : vector<24x1xf32>
    %50 = vector.extract_strided_slice %0 {offsets = [0, 38], sizes = [24, 2], strides = [1, 1]} : vector<24x100xf32> to vector<24x2xf32>
    %cst_14 = arith.constant dense<0.000000e+00> : vector<24xf32>
    %51 = vector.multi_reduction <add>, %50, %cst_14 [1] : vector<24x2xf32> to vector<24xf32>
    %52 = vector.shape_cast %51 : vector<24xf32> to vector<24x1xf32>
    %53 = vector.extract_strided_slice %0 {offsets = [0, 35], sizes = [24, 2], strides = [1, 1]} : vector<24x100xf32> to vector<24x2xf32>
    %cst_15 = arith.constant dense<0.000000e+00> : vector<24xf32>
    %54 = vector.multi_reduction <add>, %53, %cst_15 [1] : vector<24x2xf32> to vector<24xf32>
    %55 = vector.shape_cast %54 : vector<24xf32> to vector<24x1xf32>
    %56 = arith.subf %52, %55 : vector<24x1xf32>
    %57 = vector.extract_strided_slice %0 {offsets = [0, 43], sizes = [24, 2], strides = [1, 1]} : vector<24x100xf32> to vector<24x2xf32>
    %cst_16 = arith.constant dense<0.000000e+00> : vector<24xf32>
    %58 = vector.multi_reduction <add>, %57, %cst_16 [1] : vector<24x2xf32> to vector<24xf32>
    %59 = vector.shape_cast %58 : vector<24xf32> to vector<24x1xf32>
    %60 = vector.extract_strided_slice %0 {offsets = [0, 40], sizes = [24, 2], strides = [1, 1]} : vector<24x100xf32> to vector<24x2xf32>
    %cst_17 = arith.constant dense<0.000000e+00> : vector<24xf32>
    %61 = vector.multi_reduction <add>, %60, %cst_17 [1] : vector<24x2xf32> to vector<24xf32>
    %62 = vector.shape_cast %61 : vector<24xf32> to vector<24x1xf32>
    %63 = arith.subf %59, %62 : vector<24x1xf32>
    %64 = vector.extract_strided_slice %0 {offsets = [0, 48], sizes = [24, 2], strides = [1, 1]} : vector<24x100xf32> to vector<24x2xf32>
    %cst_18 = arith.constant dense<0.000000e+00> : vector<24xf32>
    %65 = vector.multi_reduction <add>, %64, %cst_18 [1] : vector<24x2xf32> to vector<24xf32>
    %66 = vector.shape_cast %65 : vector<24xf32> to vector<24x1xf32>
    %67 = vector.extract_strided_slice %0 {offsets = [0, 45], sizes = [24, 2], strides = [1, 1]} : vector<24x100xf32> to vector<24x2xf32>
    %cst_19 = arith.constant dense<0.000000e+00> : vector<24xf32>
    %68 = vector.multi_reduction <add>, %67, %cst_19 [1] : vector<24x2xf32> to vector<24xf32>
    %69 = vector.shape_cast %68 : vector<24xf32> to vector<24x1xf32>
    %70 = arith.subf %66, %69 : vector<24x1xf32>
    %71 = vector.extract_strided_slice %0 {offsets = [0, 53], sizes = [24, 2], strides = [1, 1]} : vector<24x100xf32> to vector<24x2xf32>
    %cst_20 = arith.constant dense<0.000000e+00> : vector<24xf32>
    %72 = vector.multi_reduction <add>, %71, %cst_20 [1] : vector<24x2xf32> to vector<24xf32>
    %73 = vector.shape_cast %72 : vector<24xf32> to vector<24x1xf32>
    %74 = vector.extract_strided_slice %0 {offsets = [0, 50], sizes = [24, 2], strides = [1, 1]} : vector<24x100xf32> to vector<24x2xf32>
    %cst_21 = arith.constant dense<0.000000e+00> : vector<24xf32>
    %75 = vector.multi_reduction <add>, %74, %cst_21 [1] : vector<24x2xf32> to vector<24xf32>
    %76 = vector.shape_cast %75 : vector<24xf32> to vector<24x1xf32>
    %77 = arith.subf %73, %76 : vector<24x1xf32>
    %78 = vector.extract_strided_slice %0 {offsets = [0, 58], sizes = [24, 2], strides = [1, 1]} : vector<24x100xf32> to vector<24x2xf32>
    %cst_22 = arith.constant dense<0.000000e+00> : vector<24xf32>
    %79 = vector.multi_reduction <add>, %78, %cst_22 [1] : vector<24x2xf32> to vector<24xf32>
    %80 = vector.shape_cast %79 : vector<24xf32> to vector<24x1xf32>
    %81 = vector.extract_strided_slice %0 {offsets = [0, 55], sizes = [24, 2], strides = [1, 1]} : vector<24x100xf32> to vector<24x2xf32>
    %cst_23 = arith.constant dense<0.000000e+00> : vector<24xf32>
    %82 = vector.multi_reduction <add>, %81, %cst_23 [1] : vector<24x2xf32> to vector<24xf32>
    %83 = vector.shape_cast %82 : vector<24xf32> to vector<24x1xf32>
    %84 = arith.subf %80, %83 : vector<24x1xf32>
    %85 = vector.extract_strided_slice %0 {offsets = [0, 63], sizes = [24, 2], strides = [1, 1]} : vector<24x100xf32> to vector<24x2xf32>
    %cst_24 = arith.constant dense<0.000000e+00> : vector<24xf32>
    %86 = vector.multi_reduction <add>, %85, %cst_24 [1] : vector<24x2xf32> to vector<24xf32>
    %87 = vector.shape_cast %86 : vector<24xf32> to vector<24x1xf32>
    %88 = vector.extract_strided_slice %0 {offsets = [0, 60], sizes = [24, 2], strides = [1, 1]} : vector<24x100xf32> to vector<24x2xf32>
    %cst_25 = arith.constant dense<0.000000e+00> : vector<24xf32>
    %89 = vector.multi_reduction <add>, %88, %cst_25 [1] : vector<24x2xf32> to vector<24xf32>
    %90 = vector.shape_cast %89 : vector<24xf32> to vector<24x1xf32>
    %91 = arith.subf %87, %90 : vector<24x1xf32>
    %92 = vector.extract_strided_slice %0 {offsets = [0, 68], sizes = [24, 2], strides = [1, 1]} : vector<24x100xf32> to vector<24x2xf32>
    %cst_26 = arith.constant dense<0.000000e+00> : vector<24xf32>
    %93 = vector.multi_reduction <add>, %92, %cst_26 [1] : vector<24x2xf32> to vector<24xf32>
    %94 = vector.shape_cast %93 : vector<24xf32> to vector<24x1xf32>
    %95 = vector.extract_strided_slice %0 {offsets = [0, 65], sizes = [24, 2], strides = [1, 1]} : vector<24x100xf32> to vector<24x2xf32>
    %cst_27 = arith.constant dense<0.000000e+00> : vector<24xf32>
    %96 = vector.multi_reduction <add>, %95, %cst_27 [1] : vector<24x2xf32> to vector<24xf32>
    %97 = vector.shape_cast %96 : vector<24xf32> to vector<24x1xf32>
    %98 = arith.subf %94, %97 : vector<24x1xf32>
    %99 = vector.extract_strided_slice %0 {offsets = [0, 73], sizes = [24, 2], strides = [1, 1]} : vector<24x100xf32> to vector<24x2xf32>
    %cst_28 = arith.constant dense<0.000000e+00> : vector<24xf32>
    %100 = vector.multi_reduction <add>, %99, %cst_28 [1] : vector<24x2xf32> to vector<24xf32>
    %101 = vector.shape_cast %100 : vector<24xf32> to vector<24x1xf32>
    %102 = vector.extract_strided_slice %0 {offsets = [0, 70], sizes = [24, 2], strides = [1, 1]} : vector<24x100xf32> to vector<24x2xf32>
    %cst_29 = arith.constant dense<0.000000e+00> : vector<24xf32>
    %103 = vector.multi_reduction <add>, %102, %cst_29 [1] : vector<24x2xf32> to vector<24xf32>
    %104 = vector.shape_cast %103 : vector<24xf32> to vector<24x1xf32>
    %105 = arith.subf %101, %104 : vector<24x1xf32>
    %106 = vector.extract_strided_slice %0 {offsets = [0, 78], sizes = [24, 2], strides = [1, 1]} : vector<24x100xf32> to vector<24x2xf32>
    %cst_30 = arith.constant dense<0.000000e+00> : vector<24xf32>
    %107 = vector.multi_reduction <add>, %106, %cst_30 [1] : vector<24x2xf32> to vector<24xf32>
    %108 = vector.shape_cast %107 : vector<24xf32> to vector<24x1xf32>
    %109 = vector.extract_strided_slice %0 {offsets = [0, 75], sizes = [24, 2], strides = [1, 1]} : vector<24x100xf32> to vector<24x2xf32>
    %cst_31 = arith.constant dense<0.000000e+00> : vector<24xf32>
    %110 = vector.multi_reduction <add>, %109, %cst_31 [1] : vector<24x2xf32> to vector<24xf32>
    %111 = vector.shape_cast %110 : vector<24xf32> to vector<24x1xf32>
    %112 = arith.subf %108, %111 : vector<24x1xf32>
    %113 = vector.extract_strided_slice %0 {offsets = [0, 83], sizes = [24, 2], strides = [1, 1]} : vector<24x100xf32> to vector<24x2xf32>
    %cst_32 = arith.constant dense<0.000000e+00> : vector<24xf32>
    %114 = vector.multi_reduction <add>, %113, %cst_32 [1] : vector<24x2xf32> to vector<24xf32>
    %115 = vector.shape_cast %114 : vector<24xf32> to vector<24x1xf32>
    %116 = vector.extract_strided_slice %0 {offsets = [0, 80], sizes = [24, 2], strides = [1, 1]} : vector<24x100xf32> to vector<24x2xf32>
    %cst_33 = arith.constant dense<0.000000e+00> : vector<24xf32>
    %117 = vector.multi_reduction <add>, %116, %cst_33 [1] : vector<24x2xf32> to vector<24xf32>
    %118 = vector.shape_cast %117 : vector<24xf32> to vector<24x1xf32>
    %119 = arith.subf %115, %118 : vector<24x1xf32>
    %120 = vector.extract_strided_slice %0 {offsets = [0, 88], sizes = [24, 2], strides = [1, 1]} : vector<24x100xf32> to vector<24x2xf32>
    %cst_34 = arith.constant dense<0.000000e+00> : vector<24xf32>
    %121 = vector.multi_reduction <add>, %120, %cst_34 [1] : vector<24x2xf32> to vector<24xf32>
    %122 = vector.shape_cast %121 : vector<24xf32> to vector<24x1xf32>
    %123 = vector.extract_strided_slice %0 {offsets = [0, 85], sizes = [24, 2], strides = [1, 1]} : vector<24x100xf32> to vector<24x2xf32>
    %cst_35 = arith.constant dense<0.000000e+00> : vector<24xf32>
    %124 = vector.multi_reduction <add>, %123, %cst_35 [1] : vector<24x2xf32> to vector<24xf32>
    %125 = vector.shape_cast %124 : vector<24xf32> to vector<24x1xf32>
    %126 = arith.subf %122, %125 : vector<24x1xf32>
    %127 = vector.extract_strided_slice %0 {offsets = [0, 93], sizes = [24, 2], strides = [1, 1]} : vector<24x100xf32> to vector<24x2xf32>
    %cst_36 = arith.constant dense<0.000000e+00> : vector<24xf32>
    %128 = vector.multi_reduction <add>, %127, %cst_36 [1] : vector<24x2xf32> to vector<24xf32>
    %129 = vector.shape_cast %128 : vector<24xf32> to vector<24x1xf32>
    %130 = vector.extract_strided_slice %0 {offsets = [0, 90], sizes = [24, 2], strides = [1, 1]} : vector<24x100xf32> to vector<24x2xf32>
    %cst_37 = arith.constant dense<0.000000e+00> : vector<24xf32>
    %131 = vector.multi_reduction <add>, %130, %cst_37 [1] : vector<24x2xf32> to vector<24xf32>
    %132 = vector.shape_cast %131 : vector<24xf32> to vector<24x1xf32>
    %133 = arith.subf %129, %132 : vector<24x1xf32>
    %134 = vector.extract_strided_slice %0 {offsets = [0, 98], sizes = [24, 2], strides = [1, 1]} : vector<24x100xf32> to vector<24x2xf32>
    %cst_38 = arith.constant dense<0.000000e+00> : vector<24xf32>
    %135 = vector.multi_reduction <add>, %134, %cst_38 [1] : vector<24x2xf32> to vector<24xf32>
    %136 = vector.shape_cast %135 : vector<24xf32> to vector<24x1xf32>
    %137 = vector.extract_strided_slice %0 {offsets = [0, 95], sizes = [24, 2], strides = [1, 1]} : vector<24x100xf32> to vector<24x2xf32>
    %cst_39 = arith.constant dense<0.000000e+00> : vector<24xf32>
    %138 = vector.multi_reduction <add>, %137, %cst_39 [1] : vector<24x2xf32> to vector<24xf32>
    %139 = vector.shape_cast %138 : vector<24xf32> to vector<24x1xf32>
    %140 = arith.subf %136, %139 : vector<24x1xf32>
    %141 = tpu.concatenate %7, %14, %21, %28, %35, %42, %49, %56, %63, %70, %77, %84, %91, %98, %105, %112 in 1 : vector<24x1xf32>, vector<24x1xf32>, vector<24x1xf32>, vector<24x1xf32>, vector<24x1xf32>, vector<24x1xf32>, vector<24x1xf32>, vector<24x1xf32>, vector<24x1xf32>, vector<24x1xf32>, vector<24x1xf32>, vector<24x1xf32>, vector<24x1xf32>, vector<24x1xf32>, vector<24x1xf32>, vector<24x1xf32> -> vector<24x16xf32>
    %142 = tpu.concatenate %119, %126, %133, %140 in 1 : vector<24x1xf32>, vector<24x1xf32>, vector<24x1xf32>, vector<24x1xf32> -> vector<24x4xf32>
    %143 = tpu.concatenate %141, %142 in 1 : vector<24x16xf32>, vector<24x4xf32> -> vector<24x20xf32>
    %cst_40 = arith.constant 5.000000e-01 : f32
    %144 = vector.broadcast %cst_40 : f32 to vector<24x20xf32>
    %145 = arith.mulf %143, %144 : vector<24x20xf32>
    %c0_41 = arith.constant 0 : index
    %c0_42 = arith.constant 0 : index
    %146 = vector.load %arg2[%c0_41, %c0_42] : memref<24x20xf32, #tpu.memory_space<vmem>>, vector<24x20xf32>
    tpu.vector_store %arg2[%c0_41, %c0_42], %145 {strides = array<i32>} : memref<24x20xf32, #tpu.memory_space<vmem>>, vector<24x20xf32>,
    return
  }
  func.func @transform_0(%arg0: i32) -> (i32, i32) {
    %c0_i32 = arith.constant 0 : i32
    %c0_i32_0 = arith.constant 0 : i32
    return %arg0, %c0_i32 : i32, i32
  }
  func.func @transform_1(%arg0: i32) -> (i32, i32) {
    %c0_i32 = arith.constant 0 : i32
    %c0_i32_0 = arith.constant 0 : i32
    return %arg0, %c0_i32 : i32, i32
  }
}

</mosaic_0001>

<llo_original>
// kernel: dp_pooling.1
$region0: #{dp_pooling.1}
  #allocation0 [shape = 'u32[]', space=smem, size = 0x4, offset = 0x4, fixed_abs, tag = 'smem constant byte address 0x4 - core index']
  #allocation1 [shape = 'u32[144,128]{1,0:T(1,128)}', space=vmem, size = 0x12000, scoped, tag = 'internal scratch']
  %s0 = inlined_call_operand.vmem [shape: f32[24,100], index: 0, kind: input, shape index: {}]
  %s1 = inlined_call_operand.vmem [shape: f32[24,20], index: 1, kind: output, shape index: {}]
  %s2 = sld [smem:[#allocation0]]
  $region14: #{dp_pooling.1} parent=0
    _
  %s4 = ssub.s32 1, %s2
  %s5 = scalar_select 0, %s4, %s2
  // Predicated region
  $region2: #{dp_pooling.1} parent=0 // pred_check
    _
  $region3: #{dp_pooling.1} parent=0 // pred_check_branch
    %7 = sbr.rel (0) target = $region5
  $region4: #{dp_pooling.1} parent=0 // pred_region
    _
  $region5: #{dp_pooling.1} parent=0 // pred_fallthru
    _
  %v8 = vld [vmem:[%s0] sm:$0xff]
  %v9 = vld [vmem:[%s0 + $0x8] sm:$0xff]
  %v10 = vld [vmem:[%s0 + $0x10] sm:$0xff]
  %14 = vrot.lane.b32.xlu0 %v8, 125
  %v15 = vpop.permute.xlu0 %14
  %16 = vrot.lane.b32.xlu0 %v9, 125
  %v17 = vpop.permute.xlu0 %16
  %18 = vrot.lane.b32.xlu0 %v10, 125
  %v19 = vpop.permute.xlu0 %18
  %vm23 = vcmask 15360
  %v24 = vsel %vm23, %v15, 0.0
  %25 = vadd.xlane.f32.xlu0 %v24
  %v26 = vpop.xlane.xlu0 %25
  %v27 = vsel %vm23, %v17, 0.0
  %28 = vadd.xlane.f32.xlu0 %v27
  %v29 = vpop.xlane.xlu0 %28
  %v30 = vsel %vm23, %v19, 0.0
  %31 = vadd.xlane.f32.xlu0 %v30
  %v32 = vpop.xlane.xlu0 %31
  %v33 = vsel %vm23, %v8, 0.0
  %34 = vadd.xlane.f32.xlu0 %v33
  %v35 = vpop.xlane.xlu0 %34
  %v36 = vsel %vm23, %v9, 0.0
  %37 = vadd.xlane.f32.xlu0 %v36
  %v38 = vpop.xlane.xlu0 %37
  %v39 = vsel %vm23, %v10, 0.0
  %40 = vadd.xlane.f32.xlu0 %v39
  %v41 = vpop.xlane.xlu0 %40
  %v42 = vsub.f32 %v26, %v35
  %v43 = vsub.f32 %v29, %v38
  %v44 = vsub.f32 %v32, %v41
  %45 = vrot.lane.b32.xlu0 %v8, 120
  %v46 = vpop.permute.xlu0 %45
  %47 = vrot.lane.b32.xlu0 %v9, 120
  %v48 = vpop.permute.xlu0 %47
  %49 = vrot.lane.b32.xlu0 %v10, 120
  %v50 = vpop.permute.xlu0 %49
  %v54 = vsel %vm23, %v46, 0.0
  %55 = vadd.xlane.f32.xlu0 %v54
  %v56 = vpop.xlane.xlu0 %55
  %v57 = vsel %vm23, %v48, 0.0
  %58 = vadd.xlane.f32.xlu0 %v57
  %v59 = vpop.xlane.xlu0 %58
  %v60 = vsel %vm23, %v50, 0.0
  %61 = vadd.xlane.f32.xlu0 %v60
  %v62 = vpop.xlane.xlu0 %61
  %63 = vrot.lane.b32.xlu0 %v8, 123
  %v64 = vpop.permute.xlu0 %63
  %65 = vrot.lane.b32.xlu0 %v9, 123
  %v66 = vpop.permute.xlu0 %65
  %67 = vrot.lane.b32.xlu0 %v10, 123
  %v68 = vpop.permute.xlu0 %67
  %v72 = vsel %vm23, %v64, 0.0
  %73 = vadd.xlane.f32.xlu0 %v72
  %v74 = vpop.xlane.xlu0 %73
  %v75 = vsel %vm23, %v66, 0.0
  %76 = vadd.xlane.f32.xlu0 %v75
  %v77 = vpop.xlane.xlu0 %76
  %v78 = vsel %vm23, %v68, 0.0
  %79 = vadd.xlane.f32.xlu0 %v78
  %v80 = vpop.xlane.xlu0 %79
  %v81 = vsub.f32 %v56, %v74
  %v82 = vsub.f32 %v59, %v77
  %v83 = vsub.f32 %v62, %v80
  %84 = vrot.lane.b32.xlu0 %v8, 115
  %v85 = vpop.permute.xlu0 %84
  %86 = vrot.lane.b32.xlu0 %v9, 115
  %v87 = vpop.permute.xlu0 %86
  %88 = vrot.lane.b32.xlu0 %v10, 115
  %v89 = vpop.permute.xlu0 %88
  %v93 = vsel %vm23, %v85, 0.0
  %94 = vadd.xlane.f32.xlu0 %v93
  %v95 = vpop.xlane.xlu0 %94
  %v96 = vsel %vm23, %v87, 0.0
  %97 = vadd.xlane.f32.xlu0 %v96
  %v98 = vpop.xlane.xlu0 %97
  %v99 = vsel %vm23, %v89, 0.0
  %100 = vadd.xlane.f32.xlu0 %v99
  %v101 = vpop.xlane.xlu0 %100
  %102 = vrot.lane.b32.xlu0 %v8, 118
  %v103 = vpop.permute.xlu0 %102
  %104 = vrot.lane.b32.xlu0 %v9, 118
  %v105 = vpop.permute.xlu0 %104
  %106 = vrot.lane.b32.xlu0 %v10, 118
  %v107 = vpop.permute.xlu0 %106
  %v111 = vsel %vm23, %v103, 0.0
  %112 = vadd.xlane.f32.xlu0 %v111
  %v113 = vpop.xlane.xlu0 %112
  %v114 = vsel %vm23, %v105, 0.0
  %115 = vadd.xlane.f32.xlu0 %v114
  %v116 = vpop.xlane.xlu0 %115
  %v117 = vsel %vm23, %v107, 0.0
  %118 = vadd.xlane.f32.xlu0 %v117
  %v119 = vpop.xlane.xlu0 %118
  %v120 = vsub.f32 %v95, %v113
  %v121 = vsub.f32 %v98, %v116
  %v122 = vsub.f32 %v101, %v119
  %123 = vrot.lane.b32.xlu0 %v8, 110
  %v124 = vpop.permute.xlu0 %123
  %125 = vrot.lane.b32.xlu0 %v9, 110
  %v126 = vpop.permute.xlu0 %125
  %127 = vrot.lane.b32.xlu0 %v10, 110
  %v128 = vpop.permute.xlu0 %127
  %v132 = vsel %vm23, %v124, 0.0
  %133 = vadd.xlane.f32.xlu0 %v132
  %v134 = vpop.xlane.xlu0 %133
  %v135 = vsel %vm23, %v126, 0.0
  %136 = vadd.xlane.f32.xlu0 %v135
  %v137 = vpop.xlane.xlu0 %136
  %v138 = vsel %vm23, %v128, 0.0
  %139 = vadd.xlane.f32.xlu0 %v138
  %v140 = vpop.xlane.xlu0 %139
  %141 = vrot.lane.b32.xlu0 %v8, 113
  %v142 = vpop.permute.xlu0 %141
  %143 = vrot.lane.b32.xlu0 %v9, 113
  %v144 = vpop.permute.xlu0 %143
  %145 = vrot.lane.b32.xlu0 %v10, 113
  %v146 = vpop.permute.xlu0 %145
  %v150 = vsel %vm23, %v142, 0.0
  %151 = vadd.xlane.f32.xlu0 %v150
  %v152 = vpop.xlane.xlu0 %151
  %v153 = vsel %vm23, %v144, 0.0
  %154 = vadd.xlane.f32.xlu0 %v153
  %v155 = vpop.xlane.xlu0 %154
  %v156 = vsel %vm23, %v146, 0.0
  %157 = vadd.xlane.f32.xlu0 %v156
  %v158 = vpop.xlane.xlu0 %157
  %v159 = vsub.f32 %v134, %v152
  %v160 = vsub.f32 %v137, %v155
  %v161 = vsub.f32 %v140, %v158
  %162 = vrot.lane.b32.xlu0 %v8, 105
  %v163 = vpop.permute.xlu0 %162
  %164 = vrot.lane.b32.xlu0 %v9, 105
  %v165 = vpop.permute.xlu0 %164
  %166 = vrot.lane.b32.xlu0 %v10, 105
  %v167 = vpop.permute.xlu0 %166
  %v171 = vsel %vm23, %v163, 0.0
  %172 = vadd.xlane.f32.xlu0 %v171
  %v173 = vpop.xlane.xlu0 %172
  %v174 = vsel %vm23, %v165, 0.0
  %175 = vadd.xlane.f32.xlu0 %v174
  %v176 = vpop.xlane.xlu0 %175
  %v177 = vsel %vm23, %v167, 0.0
  %178 = vadd.xlane.f32.xlu0 %v177
  %v179 = vpop.xlane.xlu0 %178
  %180 = vrot.lane.b32.xlu0 %v8, 108
  %v181 = vpop.permute.xlu0 %180
  %182 = vrot.lane.b32.xlu0 %v9, 108
  %v183 = vpop.permute.xlu0 %182
  %184 = vrot.lane.b32.xlu0 %v10, 108
  %v185 = vpop.permute.xlu0 %184
  %v189 = vsel %vm23, %v181, 0.0
  %190 = vadd.xlane.f32.xlu0 %v189
  %v191 = vpop.xlane.xlu0 %190
  %v192 = vsel %vm23, %v183, 0.0
  %193 = vadd.xlane.f32.xlu0 %v192
  %v194 = vpop.xlane.xlu0 %193
  %v195 = vsel %vm23, %v185, 0.0
  %196 = vadd.xlane.f32.xlu0 %v195
  %v197 = vpop.xlane.xlu0 %196
  %v198 = vsub.f32 %v173, %v191
  %v199 = vsub.f32 %v176, %v194
  %v200 = vsub.f32 %v179, %v197
  %201 = vrot.lane.b32.xlu0 %v8, 100
  %v202 = vpop.permute.xlu0 %201
  %203 = vrot.lane.b32.xlu0 %v9, 100
  %v204 = vpop.permute.xlu0 %203
  %205 = vrot.lane.b32.xlu0 %v10, 100
  %v206 = vpop.permute.xlu0 %205
  %v210 = vsel %vm23, %v202, 0.0
  %211 = vadd.xlane.f32.xlu0 %v210
  %v212 = vpop.xlane.xlu0 %211
  %v213 = vsel %vm23, %v204, 0.0
  %214 = vadd.xlane.f32.xlu0 %v213
  %v215 = vpop.xlane.xlu0 %214
  %v216 = vsel %vm23, %v206, 0.0
  %217 = vadd.xlane.f32.xlu0 %v216
  %v218 = vpop.xlane.xlu0 %217
  %219 = vrot.lane.b32.xlu0 %v8, 103
  %v220 = vpop.permute.xlu0 %219
  %221 = vrot.lane.b32.xlu0 %v9, 103
  %v222 = vpop.permute.xlu0 %221
  %223 = vrot.lane.b32.xlu0 %v10, 103
  %v224 = vpop.permute.xlu0 %223
  %v228 = vsel %vm23, %v220, 0.0
  %229 = vadd.xlane.f32.xlu0 %v228
  %v230 = vpop.xlane.xlu0 %229
  %v231 = vsel %vm23, %v222, 0.0
  %232 = vadd.xlane.f32.xlu0 %v231
  %v233 = vpop.xlane.xlu0 %232
  %v234 = vsel %vm23, %v224, 0.0
  %235 = vadd.xlane.f32.xlu0 %v234
  %v236 = vpop.xlane.xlu0 %235
  %v237 = vsub.f32 %v212, %v230
  %v238 = vsub.f32 %v215, %v233
  %v239 = vsub.f32 %v218, %v236
  %240 = vrot.lane.b32.xlu0 %v8, 95
  %v241 = vpop.permute.xlu0 %240
  %242 = vrot.lane.b32.xlu0 %v9, 95
  %v243 = vpop.permute.xlu0 %242
  %244 = vrot.lane.b32.xlu0 %v10, 95
  %v245 = vpop.permute.xlu0 %244
  %v249 = vsel %vm23, %v241, 0.0
  %250 = vadd.xlane.f32.xlu0 %v249
  %v251 = vpop.xlane.xlu0 %250
  %v252 = vsel %vm23, %v243, 0.0
  %253 = vadd.xlane.f32.xlu0 %v252
  %v254 = vpop.xlane.xlu0 %253
  %v255 = vsel %vm23, %v245, 0.0
  %256 = vadd.xlane.f32.xlu0 %v255
  %v257 = vpop.xlane.xlu0 %256
  %258 = vrot.lane.b32.xlu0 %v8, 98
  %v259 = vpop.permute.xlu0 %258
  %260 = vrot.lane.b32.xlu0 %v9, 98
  %v261 = vpop.permute.xlu0 %260
  %262 = vrot.lane.b32.xlu0 %v10, 98
  %v263 = vpop.permute.xlu0 %262
  %v267 = vsel %vm23, %v259, 0.0
  %268 = vadd.xlane.f32.xlu0 %v267
  %v269 = vpop.xlane.xlu0 %268
  %v270 = vsel %vm23, %v261, 0.0
  %271 = vadd.xlane.f32.xlu0 %v270
  %v272 = vpop.xlane.xlu0 %271
  %v273 = vsel %vm23, %v263, 0.0
  %274 = vadd.xlane.f32.xlu0 %v273
  %v275 = vpop.xlane.xlu0 %274
  %v276 = vsub.f32 %v251, %v269
  %v277 = vsub.f32 %v254, %v272
  %v278 = vsub.f32 %v257, %v275
  %279 = vrot.lane.b32.xlu0 %v8, 90
  %v280 = vpop.permute.xlu0 %279
  %281 = vrot.lane.b32.xlu0 %v9, 90
  %v282 = vpop.permute.xlu0 %281
  %283 = vrot.lane.b32.xlu0 %v10, 90
  %v284 = vpop.permute.xlu0 %283
  %v288 = vsel %vm23, %v280, 0.0
  %289 = vadd.xlane.f32.xlu0 %v288
  %v290 = vpop.xlane.xlu0 %289
  %v291 = vsel %vm23, %v282, 0.0
  %292 = vadd.xlane.f32.xlu0 %v291
  %v293 = vpop.xlane.xlu0 %292
  %v294 = vsel %vm23, %v284, 0.0
  %295 = vadd.xlane.f32.xlu0 %v294
  %v296 = vpop.xlane.xlu0 %295
  %297 = vrot.lane.b32.xlu0 %v8, 93
  %v298 = vpop.permute.xlu0 %297
  %299 = vrot.lane.b32.xlu0 %v9, 93
  %v300 = vpop.permute.xlu0 %299
  %301 = vrot.lane.b32.xlu0 %v10, 93
  %v302 = vpop.permute.xlu0 %301
  %v306 = vsel %vm23, %v298, 0.0
  %307 = vadd.xlane.f32.xlu0 %v306
  %v308 = vpop.xlane.xlu0 %307
  %v309 = vsel %vm23, %v300, 0.0
  %310 = vadd.xlane.f32.xlu0 %v309
  %v311 = vpop.xlane.xlu0 %310
  %v312 = vsel %vm23, %v302, 0.0
  %313 = vadd.xlane.f32.xlu0 %v312
  %v314 = vpop.xlane.xlu0 %313
  %v315 = vsub.f32 %v290, %v308
  %v316 = vsub.f32 %v293, %v311
  %v317 = vsub.f32 %v296, %v314
  %318 = vrot.lane.b32.xlu0 %v8, 85
  %v319 = vpop.permute.xlu0 %318
  %320 = vrot.lane.b32.xlu0 %v9, 85
  %v321 = vpop.permute.xlu0 %320
  %322 = vrot.lane.b32.xlu0 %v10, 85
  %v323 = vpop.permute.xlu0 %322
  %v327 = vsel %vm23, %v319, 0.0
  %328 = vadd.xlane.f32.xlu0 %v327
  %v329 = vpop.xlane.xlu0 %328
  %v330 = vsel %vm23, %v321, 0.0
  %331 = vadd.xlane.f32.xlu0 %v330
  %v332 = vpop.xlane.xlu0 %331
  %v333 = vsel %vm23, %v323, 0.0
  %334 = vadd.xlane.f32.xlu0 %v333
  %v335 = vpop.xlane.xlu0 %334
  %336 = vrot.lane.b32.xlu0 %v8, 88
  %v337 = vpop.permute.xlu0 %336
  %338 = vrot.lane.b32.xlu0 %v9, 88
  %v339 = vpop.permute.xlu0 %338
  %340 = vrot.lane.b32.xlu0 %v10, 88
  %v341 = vpop.permute.xlu0 %340
  %v345 = vsel %vm23, %v337, 0.0
  %346 = vadd.xlane.f32.xlu0 %v345
  %v347 = vpop.xlane.xlu0 %346
  %v348 = vsel %vm23, %v339, 0.0
  %349 = vadd.xlane.f32.xlu0 %v348
  %v350 = vpop.xlane.xlu0 %349
  %v351 = vsel %vm23, %v341, 0.0
  %352 = vadd.xlane.f32.xlu0 %v351
  %v353 = vpop.xlane.xlu0 %352
  %v354 = vsub.f32 %v329, %v347
  %v355 = vsub.f32 %v332, %v350
  %v356 = vsub.f32 %v335, %v353
  %357 = vrot.lane.b32.xlu0 %v8, 80
  %v358 = vpop.permute.xlu0 %357
  %359 = vrot.lane.b32.xlu0 %v9, 80
  %v360 = vpop.permute.xlu0 %359
  %361 = vrot.lane.b32.xlu0 %v10, 80
  %v362 = vpop.permute.xlu0 %361
  %v366 = vsel %vm23, %v358, 0.0
  %367 = vadd.xlane.f32.xlu0 %v366
  %v368 = vpop.xlane.xlu0 %367
  %v369 = vsel %vm23, %v360, 0.0
  %370 = vadd.xlane.f32.xlu0 %v369
  %v371 = vpop.xlane.xlu0 %370
  %v372 = vsel %vm23, %v362, 0.0
  %373 = vadd.xlane.f32.xlu0 %v372
  %v374 = vpop.xlane.xlu0 %373
  %375 = vrot.lane.b32.xlu0 %v8, 83
  %v376 = vpop.permute.xlu0 %375
  %377 = vrot.lane.b32.xlu0 %v9, 83
  %v378 = vpop.permute.xlu0 %377
  %379 = vrot.lane.b32.xlu0 %v10, 83
  %v380 = vpop.permute.xlu0 %379
  %v384 = vsel %vm23, %v376, 0.0
  %385 = vadd.xlane.f32.xlu0 %v384
  %v386 = vpop.xlane.xlu0 %385
  %v387 = vsel %vm23, %v378, 0.0
  %388 = vadd.xlane.f32.xlu0 %v387
  %v389 = vpop.xlane.xlu0 %388
  %v390 = vsel %vm23, %v380, 0.0
  %391 = vadd.xlane.f32.xlu0 %v390
  %v392 = vpop.xlane.xlu0 %391
  %v393 = vsub.f32 %v368, %v386
  %v394 = vsub.f32 %v371, %v389
  %v395 = vsub.f32 %v374, %v392
  %396 = vrot.lane.b32.xlu0 %v8, 75
  %v397 = vpop.permute.xlu0 %396
  %398 = vrot.lane.b32.xlu0 %v9, 75
  %v399 = vpop.permute.xlu0 %398
  %400 = vrot.lane.b32.xlu0 %v10, 75
  %v401 = vpop.permute.xlu0 %400
  %v405 = vsel %vm23, %v397, 0.0
  %406 = vadd.xlane.f32.xlu0 %v405
  %v407 = vpop.xlane.xlu0 %406
  %v408 = vsel %vm23, %v399, 0.0
  %409 = vadd.xlane.f32.xlu0 %v408
  %v410 = vpop.xlane.xlu0 %409
  %v411 = vsel %vm23, %v401, 0.0
  %412 = vadd.xlane.f32.xlu0 %v411
  %v413 = vpop.xlane.xlu0 %412
  %414 = vrot.lane.b32.xlu0 %v8, 78
  %v415 = vpop.permute.xlu0 %414
  %416 = vrot.lane.b32.xlu0 %v9, 78
  %v417 = vpop.permute.xlu0 %416
  %418 = vrot.lane.b32.xlu0 %v10, 78
  %v419 = vpop.permute.xlu0 %418
  %v423 = vsel %vm23, %v415, 0.0
  %424 = vadd.xlane.f32.xlu0 %v423
  %v425 = vpop.xlane.xlu0 %424
  %v426 = vsel %vm23, %v417, 0.0
  %427 = vadd.xlane.f32.xlu0 %v426
  %v428 = vpop.xlane.xlu0 %427
  %v429 = vsel %vm23, %v419, 0.0
  %430 = vadd.xlane.f32.xlu0 %v429
  %v431 = vpop.xlane.xlu0 %430
  %v432 = vsub.f32 %v407, %v425
  %v433 = vsub.f32 %v410, %v428
  %v434 = vsub.f32 %v413, %v431
  %435 = vrot.lane.b32.xlu0 %v8, 70
  %v436 = vpop.permute.xlu0 %435
  %437 = vrot.lane.b32.xlu0 %v9, 70
  %v438 = vpop.permute.xlu0 %437
  %439 = vrot.lane.b32.xlu0 %v10, 70
  %v440 = vpop.permute.xlu0 %439
  %v444 = vsel %vm23, %v436, 0.0
  %445 = vadd.xlane.f32.xlu0 %v444
  %v446 = vpop.xlane.xlu0 %445
  %v447 = vsel %vm23, %v438, 0.0
  %448 = vadd.xlane.f32.xlu0 %v447
  %v449 = vpop.xlane.xlu0 %448
  %v450 = vsel %vm23, %v440, 0.0
  %451 = vadd.xlane.f32.xlu0 %v450
  %v452 = vpop.xlane.xlu0 %451
  %453 = vrot.lane.b32.xlu0 %v8, 73
  %v454 = vpop.permute.xlu0 %453
  %455 = vrot.lane.b32.xlu0 %v9, 73
  %v456 = vpop.permute.xlu0 %455
  %457 = vrot.lane.b32.xlu0 %v10, 73
  %v458 = vpop.permute.xlu0 %457
  %v462 = vsel %vm23, %v454, 0.0
  %463 = vadd.xlane.f32.xlu0 %v462
  %v464 = vpop.xlane.xlu0 %463
  %v465 = vsel %vm23, %v456, 0.0
  %466 = vadd.xlane.f32.xlu0 %v465
  %v467 = vpop.xlane.xlu0 %466
  %v468 = vsel %vm23, %v458, 0.0
  %469 = vadd.xlane.f32.xlu0 %v468
  %v470 = vpop.xlane.xlu0 %469
  %v471 = vsub.f32 %v446, %v464
  %v472 = vsub.f32 %v449, %v467
  %v473 = vsub.f32 %v452, %v470
  %474 = vrot.lane.b32.xlu0 %v8, 65
  %v475 = vpop.permute.xlu0 %474
  %476 = vrot.lane.b32.xlu0 %v9, 65
  %v477 = vpop.permute.xlu0 %476
  %478 = vrot.lane.b32.xlu0 %v10, 65
  %v479 = vpop.permute.xlu0 %478
  %v483 = vsel %vm23, %v475, 0.0
  %484 = vadd.xlane.f32.xlu0 %v483
  %v485 = vpop.xlane.xlu0 %484
  %v486 = vsel %vm23, %v477, 0.0
  %487 = vadd.xlane.f32.xlu0 %v486
  %v488 = vpop.xlane.xlu0 %487
  %v489 = vsel %vm23, %v479, 0.0
  %490 = vadd.xlane.f32.xlu0 %v489
  %v491 = vpop.xlane.xlu0 %490
  %492 = vrot.lane.b32.xlu0 %v8, 68
  %v493 = vpop.permute.xlu0 %492
  %494 = vrot.lane.b32.xlu0 %v9, 68
  %v495 = vpop.permute.xlu0 %494
  %496 = vrot.lane.b32.xlu0 %v10, 68
  %v497 = vpop.permute.xlu0 %496
  %v501 = vsel %vm23, %v493, 0.0
  %502 = vadd.xlane.f32.xlu0 %v501
  %v503 = vpop.xlane.xlu0 %502
  %v504 = vsel %vm23, %v495, 0.0
  %505 = vadd.xlane.f32.xlu0 %v504
  %v506 = vpop.xlane.xlu0 %505
  %v507 = vsel %vm23, %v497, 0.0
  %508 = vadd.xlane.f32.xlu0 %v507
  %v509 = vpop.xlane.xlu0 %508
  %v510 = vsub.f32 %v485, %v503
  %v511 = vsub.f32 %v488, %v506
  %v512 = vsub.f32 %v491, %v509
  %513 = vrot.lane.b32.xlu0 %v8, 60
  %v514 = vpop.permute.xlu0 %513
  %515 = vrot.lane.b32.xlu0 %v9, 60
  %v516 = vpop.permute.xlu0 %515
  %517 = vrot.lane.b32.xlu0 %v10, 60
  %v518 = vpop.permute.xlu0 %517
  %v522 = vsel %vm23, %v514, 0.0
  %523 = vadd.xlane.f32.xlu0 %v522
  %v524 = vpop.xlane.xlu0 %523
  %v525 = vsel %vm23, %v516, 0.0
  %526 = vadd.xlane.f32.xlu0 %v525
  %v527 = vpop.xlane.xlu0 %526
  %v528 = vsel %vm23, %v518, 0.0
  %529 = vadd.xlane.f32.xlu0 %v528
  %v530 = vpop.xlane.xlu0 %529
  %531 = vrot.lane.b32.xlu0 %v8, 63
  %v532 = vpop.permute.xlu0 %531
  %533 = vrot.lane.b32.xlu0 %v9, 63
  %v534 = vpop.permute.xlu0 %533
  %535 = vrot.lane.b32.xlu0 %v10, 63
  %v536 = vpop.permute.xlu0 %535
  %v540 = vsel %vm23, %v532, 0.0
  %541 = vadd.xlane.f32.xlu0 %v540
  %v542 = vpop.xlane.xlu0 %541
  %v543 = vsel %vm23, %v534, 0.0
  %544 = vadd.xlane.f32.xlu0 %v543
  %v545 = vpop.xlane.xlu0 %544
  %v546 = vsel %vm23, %v536, 0.0
  %547 = vadd.xlane.f32.xlu0 %v546
  %v548 = vpop.xlane.xlu0 %547
  %v549 = vsub.f32 %v524, %v542
  %v550 = vsub.f32 %v527, %v545
  %v551 = vsub.f32 %v530, %v548
  %552 = vrot.lane.b32.xlu0 %v8, 55
  %v553 = vpop.permute.xlu0 %552
  %554 = vrot.lane.b32.xlu0 %v9, 55
  %v555 = vpop.permute.xlu0 %554
  %556 = vrot.lane.b32.xlu0 %v10, 55
  %v557 = vpop.permute.xlu0 %556
  %v561 = vsel %vm23, %v553, 0.0
  %562 = vadd.xlane.f32.xlu0 %v561
  %v563 = vpop.xlane.xlu0 %562
  %v564 = vsel %vm23, %v555, 0.0
  %565 = vadd.xlane.f32.xlu0 %v564
  %v566 = vpop.xlane.xlu0 %565
  %v567 = vsel %vm23, %v557, 0.0
  %568 = vadd.xlane.f32.xlu0 %v567
  %v569 = vpop.xlane.xlu0 %568
  %570 = vrot.lane.b32.xlu0 %v8, 58
  %v571 = vpop.permute.xlu0 %570
  %572 = vrot.lane.b32.xlu0 %v9, 58
  %v573 = vpop.permute.xlu0 %572
  %574 = vrot.lane.b32.xlu0 %v10, 58
  %v575 = vpop.permute.xlu0 %574
  %v579 = vsel %vm23, %v571, 0.0
  %580 = vadd.xlane.f32.xlu0 %v579
  %v581 = vpop.xlane.xlu0 %580
  %v582 = vsel %vm23, %v573, 0.0
  %583 = vadd.xlane.f32.xlu0 %v582
  %v584 = vpop.xlane.xlu0 %583
  %v585 = vsel %vm23, %v575, 0.0
  %586 = vadd.xlane.f32.xlu0 %v585
  %v587 = vpop.xlane.xlu0 %586
  %v588 = vsub.f32 %v563, %v581
  %v589 = vsub.f32 %v566, %v584
  %v590 = vsub.f32 %v569, %v587
  %591 = vrot.lane.b32.xlu0 %v8, 50
  %v592 = vpop.permute.xlu0 %591
  %593 = vrot.lane.b32.xlu0 %v9, 50
  %v594 = vpop.permute.xlu0 %593
  %595 = vrot.lane.b32.xlu0 %v10, 50
  %v596 = vpop.permute.xlu0 %595
  %v600 = vsel %vm23, %v592, 0.0
  %601 = vadd.xlane.f32.xlu0 %v600
  %v602 = vpop.xlane.xlu0 %601
  %v603 = vsel %vm23, %v594, 0.0
  %604 = vadd.xlane.f32.xlu0 %v603
  %v605 = vpop.xlane.xlu0 %604
  %v606 = vsel %vm23, %v596, 0.0
  %607 = vadd.xlane.f32.xlu0 %v606
  %v608 = vpop.xlane.xlu0 %607
  %609 = vrot.lane.b32.xlu0 %v8, 53
  %v610 = vpop.permute.xlu0 %609
  %611 = vrot.lane.b32.xlu0 %v9, 53
  %v612 = vpop.permute.xlu0 %611
  %613 = vrot.lane.b32.xlu0 %v10, 53
  %v614 = vpop.permute.xlu0 %613
  %v618 = vsel %vm23, %v610, 0.0
  %619 = vadd.xlane.f32.xlu0 %v618
  %v620 = vpop.xlane.xlu0 %619
  %v621 = vsel %vm23, %v612, 0.0
  %622 = vadd.xlane.f32.xlu0 %v621
  %v623 = vpop.xlane.xlu0 %622
  %v624 = vsel %vm23, %v614, 0.0
  %625 = vadd.xlane.f32.xlu0 %v624
  %v626 = vpop.xlane.xlu0 %625
  %v627 = vsub.f32 %v602, %v620
  %v628 = vsub.f32 %v605, %v623
  %v629 = vsub.f32 %v608, %v626
  %630 = vrot.lane.b32.xlu0 %v8, 45
  %v631 = vpop.permute.xlu0 %630
  %632 = vrot.lane.b32.xlu0 %v9, 45
  %v633 = vpop.permute.xlu0 %632
  %634 = vrot.lane.b32.xlu0 %v10, 45
  %v635 = vpop.permute.xlu0 %634
  %v639 = vsel %vm23, %v631, 0.0
  %640 = vadd.xlane.f32.xlu0 %v639
  %v641 = vpop.xlane.xlu0 %640
  %v642 = vsel %vm23, %v633, 0.0
  %643 = vadd.xlane.f32.xlu0 %v642
  %v644 = vpop.xlane.xlu0 %643
  %v645 = vsel %vm23, %v635, 0.0
  %646 = vadd.xlane.f32.xlu0 %v645
  %v647 = vpop.xlane.xlu0 %646
  %648 = vrot.lane.b32.xlu0 %v8, 48
  %v649 = vpop.permute.xlu0 %648
  %650 = vrot.lane.b32.xlu0 %v9, 48
  %v651 = vpop.permute.xlu0 %650
  %652 = vrot.lane.b32.xlu0 %v10, 48
  %v653 = vpop.permute.xlu0 %652
  %v657 = vsel %vm23, %v649, 0.0
  %658 = vadd.xlane.f32.xlu0 %v657
  %v659 = vpop.xlane.xlu0 %658
  %v660 = vsel %vm23, %v651, 0.0
  %661 = vadd.xlane.f32.xlu0 %v660
  %v662 = vpop.xlane.xlu0 %661
  %v663 = vsel %vm23, %v653, 0.0
  %664 = vadd.xlane.f32.xlu0 %v663
  %v665 = vpop.xlane.xlu0 %664
  %v666 = vsub.f32 %v641, %v659
  %v667 = vsub.f32 %v644, %v662
  %v668 = vsub.f32 %v647, %v665
  %669 = vrot.lane.b32.xlu0 %v8, 40
  %v670 = vpop.permute.xlu0 %669
  %671 = vrot.lane.b32.xlu0 %v9, 40
  %v672 = vpop.permute.xlu0 %671
  %673 = vrot.lane.b32.xlu0 %v10, 40
  %v674 = vpop.permute.xlu0 %673
  %v678 = vsel %vm23, %v670, 0.0
  %679 = vadd.xlane.f32.xlu0 %v678
  %v680 = vpop.xlane.xlu0 %679
  %v681 = vsel %vm23, %v672, 0.0
  %682 = vadd.xlane.f32.xlu0 %v681
  %v683 = vpop.xlane.xlu0 %682
  %v684 = vsel %vm23, %v674, 0.0
  %685 = vadd.xlane.f32.xlu0 %v684
  %v686 = vpop.xlane.xlu0 %685
  %687 = vrot.lane.b32.xlu0 %v8, 43
  %v688 = vpop.permute.xlu0 %687
  %689 = vrot.lane.b32.xlu0 %v9, 43
  %v690 = vpop.permute.xlu0 %689
  %691 = vrot.lane.b32.xlu0 %v10, 43
  %v692 = vpop.permute.xlu0 %691
  %v696 = vsel %vm23, %v688, 0.0
  %697 = vadd.xlane.f32.xlu0 %v696
  %v698 = vpop.xlane.xlu0 %697
  %v699 = vsel %vm23, %v690, 0.0
  %700 = vadd.xlane.f32.xlu0 %v699
  %v701 = vpop.xlane.xlu0 %700
  %v702 = vsel %vm23, %v692, 0.0
  %703 = vadd.xlane.f32.xlu0 %v702
  %v704 = vpop.xlane.xlu0 %703
  %v705 = vsub.f32 %v680, %v698
  %v706 = vsub.f32 %v683, %v701
  %v707 = vsub.f32 %v686, %v704
  %708 = vrot.lane.b32.xlu0 %v8, 35
  %v709 = vpop.permute.xlu0 %708
  %710 = vrot.lane.b32.xlu0 %v9, 35
  %v711 = vpop.permute.xlu0 %710
  %712 = vrot.lane.b32.xlu0 %v10, 35
  %v713 = vpop.permute.xlu0 %712
  %v717 = vsel %vm23, %v709, 0.0
  %718 = vadd.xlane.f32.xlu0 %v717
  %v719 = vpop.xlane.xlu0 %718
  %v720 = vsel %vm23, %v711, 0.0
  %721 = vadd.xlane.f32.xlu0 %v720
  %v722 = vpop.xlane.xlu0 %721
  %v723 = vsel %vm23, %v713, 0.0
  %724 = vadd.xlane.f32.xlu0 %v723
  %v725 = vpop.xlane.xlu0 %724
  %726 = vrot.lane.b32.xlu0 %v8, 38
  %v727 = vpop.permute.xlu0 %726
  %728 = vrot.lane.b32.xlu0 %v9, 38
  %v729 = vpop.permute.xlu0 %728
  %730 = vrot.lane.b32.xlu0 %v10, 38
  %v731 = vpop.permute.xlu0 %730
  %v735 = vsel %vm23, %v727, 0.0
  %736 = vadd.xlane.f32.xlu0 %v735
  %v737 = vpop.xlane.xlu0 %736
  %v738 = vsel %vm23, %v729, 0.0
  %739 = vadd.xlane.f32.xlu0 %v738
  %v740 = vpop.xlane.xlu0 %739
  %v741 = vsel %vm23, %v731, 0.0
  %742 = vadd.xlane.f32.xlu0 %v741
  %v743 = vpop.xlane.xlu0 %742
  %v744 = vsub.f32 %v719, %v737
  %v745 = vsub.f32 %v722, %v740
  %v746 = vsub.f32 %v725, %v743
  %747 = vrot.lane.b32.xlu0 %v8, 30
  %v748 = vpop.permute.xlu0 %747
  %749 = vrot.lane.b32.xlu0 %v9, 30
  %v750 = vpop.permute.xlu0 %749
  %751 = vrot.lane.b32.xlu0 %v10, 30
  %v752 = vpop.permute.xlu0 %751
  %v756 = vsel %vm23, %v748, 0.0
  %757 = vadd.xlane.f32.xlu0 %v756
  %v758 = vpop.xlane.xlu0 %757
  %v759 = vsel %vm23, %v750, 0.0
  %760 = vadd.xlane.f32.xlu0 %v759
  %v761 = vpop.xlane.xlu0 %760
  %v762 = vsel %vm23, %v752, 0.0
  %763 = vadd.xlane.f32.xlu0 %v762
  %v764 = vpop.xlane.xlu0 %763
  %765 = vrot.lane.b32.xlu0 %v8, 33
  %v766 = vpop.permute.xlu0 %765
  %767 = vrot.lane.b32.xlu0 %v9, 33
  %v768 = vpop.permute.xlu0 %767
  %769 = vrot.lane.b32.xlu0 %v10, 33
  %v770 = vpop.permute.xlu0 %769
  %v774 = vsel %vm23, %v766, 0.0
  %775 = vadd.xlane.f32.xlu0 %v774
  %v776 = vpop.xlane.xlu0 %775
  %v777 = vsel %vm23, %v768, 0.0
  %778 = vadd.xlane.f32.xlu0 %v777
  %v779 = vpop.xlane.xlu0 %778
  %v780 = vsel %vm23, %v770, 0.0
  %781 = vadd.xlane.f32.xlu0 %v780
  %v782 = vpop.xlane.xlu0 %781
  %v783 = vsub.f32 %v758, %v776
  %v784 = vsub.f32 %v761, %v779
  %v785 = vsub.f32 %v764, %v782
  %vm786 = vcmask 7168
  %v787 = vsel %vm786, %v42, %v81
  %v788 = vsel %vm786, %v43, %v82
  %v789 = vsel %vm786, %v44, %v83
  %v790 = vsel %vm23, %v787, %v120
  %v791 = vsel %vm23, %v788, %v121
  %v792 = vsel %vm23, %v789, %v122
  %vm793 = vcmask 23552
  %v794 = vsel %vm793, %v790, %v159
  %v795 = vsel %vm793, %v791, %v160
  %v796 = vsel %vm793, %v792, %v161
  %vm797 = vcmask 31744
  %v798 = vsel %vm797, %v794, %v198
  %v799 = vsel %vm797, %v795, %v199
  %v800 = vsel %vm797, %v796, %v200
  %vm801 = vcmask 39936
  %v802 = vsel %vm801, %v798, %v237
  %v803 = vsel %vm801, %v799, %v238
  %v804 = vsel %vm801, %v800, %v239
  %vm805 = vcmask 48128
  %v806 = vsel %vm805, %v802, %v276
  %v807 = vsel %vm805, %v803, %v277
  %v808 = vsel %vm805, %v804, %v278
  %vm809 = vcmask 56320
  %v810 = vsel %vm809, %v806, %v315
  %v811 = vsel %vm809, %v807, %v316
  %v812 = vsel %vm809, %v808, %v317
  %vm813 = vcmask 64512
  %v814 = vsel %vm813, %v810, %v354
  %v815 = vsel %vm813, %v811, %v355
  %v816 = vsel %vm813, %v812, %v356
  %vm817 = vcmask 72704
  %v818 = vsel %vm817, %v814, %v393
  %v819 = vsel %vm817, %v815, %v394
  %v820 = vsel %vm817, %v816, %v395
  %vm821 = vcmask 80896
  %v822 = vsel %vm821, %v818, %v432
  %v823 = vsel %vm821, %v819, %v433
  %v824 = vsel %vm821, %v820, %v434
  %vm825 = vcmask 89088
  %v826 = vsel %vm825, %v822, %v471
  %v827 = vsel %vm825, %v823, %v472
  %v828 = vsel %vm825, %v824, %v473
  %vm829 = vcmask 97280
  %v830 = vsel %vm829, %v826, %v510
  %v831 = vsel %vm829, %v827, %v511
  %v832 = vsel %vm829, %v828, %v512
  %vm833 = vcmask 105472
  %v834 = vsel %vm833, %v830, %v549
  %v835 = vsel %vm833, %v831, %v550
  %v836 = vsel %vm833, %v832, %v551
  %vm837 = vcmask 113664
  %v838 = vsel %vm837, %v834, %v588
  %v839 = vsel %vm837, %v835, %v589
  %v840 = vsel %vm837, %v836, %v590
  %vm841 = vcmask 121856
  %v842 = vsel %vm841, %v838, %v627
  %v843 = vsel %vm841, %v839, %v628
  %v844 = vsel %vm841, %v840, %v629
  %v845 = vsel %vm786, %v666, %v705
  %v846 = vsel %vm786, %v667, %v706
  %v847 = vsel %vm786, %v668, %v707
  %v848 = vsel %vm23, %v845, %v744
  %v849 = vsel %vm23, %v846, %v745
  %v850 = vsel %vm23, %v847, %v746
  %v851 = vsel %vm793, %v848, %v783
  %v852 = vsel %vm793, %v849, %v784
  %v853 = vsel %vm793, %v850, %v785
  %857 = vrot.lane.b32.xlu0 %v851, 16
  %v858 = vpop.permute.xlu0 %857
  %859 = vrot.lane.b32.xlu0 %v852, 16
  %v860 = vpop.permute.xlu0 %859
  %861 = vrot.lane.b32.xlu0 %v853, 16
  %v862 = vpop.permute.xlu0 %861
  %vm866 = vcmask 130048
  %v867 = vsel %vm866, %v842, %v858
  %v868 = vsel %vm866, %v843, %v860
  %v869 = vsel %vm866, %v844, %v862
  %v870 = vmul.f32 %v867, 0.5
  %v871 = vmul.f32 %v868, 0.5
  %v872 = vmul.f32 %v869, 0.5
  %vm873 = vcmask 162816
  %874 = vst.msk [vmem:[%s1] sm:$0xff] %vm873, %v870
  %875 = vst.msk [vmem:[%s1 + $0x8] sm:$0xff] %vm873, %v871
  %876 = vst.msk [vmem:[%s1 + $0x10] sm:$0xff] %vm873, %v872
  // Predicated region
  $region6: #{dp_pooling.1} parent=0 // pred_check
    _
  $region7: #{dp_pooling.1} parent=0 // pred_check_branch
    %878 = sbr.rel (0) target = $region9
  $region8: #{dp_pooling.1} parent=0 // pred_region
    _
  $region9: #{dp_pooling.1} parent=0 // pred_fallthru
    _
  // Predicated region
  $region10: #{dp_pooling.1} parent=0 // pred_check
    _
  $region11: #{dp_pooling.1} parent=0 // pred_check_branch
    %880 = sbr.rel (0) target = $region13
  $region12: #{dp_pooling.1} parent=0 // pred_region
    _
  $region13: #{dp_pooling.1} parent=0 // pred_fallthru
    _

</llo_original>
